<compile_context>
chip_gen: v7x
topology: tpu7x:2x2x1
jax: 0.10.0
libtpu: 0.0.40
codegen_flags: <defaults>
</compile_context>

<pallas_src>
import jax
import jax.numpy as jnp
from jax.experimental import pallas as pl
from jax.experimental.pallas import tpu as pltpu


def _round_up(x, m):
    return (x + m - 1) // m * m


def _patch_embed_kernel(p_ref, w_ref, b_ref, o_ref):
    # p_ref: (tm, K)   w_ref: (K, Np)   b_ref: (1, Np)   o_ref: (tm, Np)
    acc = jnp.dot(p_ref[...], w_ref[...], preferred_element_type=jnp.float32)
    o_ref[...] = (acc + b_ref[...].astype(jnp.float32)).astype(o_ref.dtype)


def _pick_row_tile(M, K, Np, in_itemsize, out_itemsize, *, max_tm=1024,
                   vmem_budget=12 * 1024 * 1024):
    """Largest power-of-two row tile (>=16) whose double-buffered blocks fit."""
    tm = max_tm
    while tm > 16:
        need = 2 * tm * (K * in_itemsize + Np * out_itemsize)  # in + out blocks, x2 buffers
        if need <= vmem_budget:
            break
        tm //= 2
    # Don't use a tile bigger than the (16-aligned) row count.
    tm = min(tm, _round_up(M, 16))
    return tm


def _linear_pallas(patches2d, weight, bias, *, out_dtype=None, max_tm=1024):
    """(M, K) @ (K, N) + (N,) -> (M, N), tuned for tiny K / mem-bound streaming."""
    M, K = patches2d.shape
    Kw, N = weight.shape
    assert Kw == K
    out_dtype = patches2d.dtype if out_dtype is None else out_dtype

    # Lane-dense output: pad N (d_model) up to a multiple of 128, slice back after.
    Np = _round_up(N, 128)
    if Np != N:
        weight = jnp.pad(weight, ((0, 0), (0, Np - N)))
        bias = jnp.pad(bias, (0, Np - N))
    bias2d = bias.reshape(1, Np)

    in_itemsize = jnp.dtype(patches2d.dtype).itemsize
    out_itemsize = jnp.dtype(out_dtype).itemsize
    tm = _pick_row_tile(M, K, Np, in_itemsize, out_itemsize, max_tm=max_tm)

    # Pad the row count up to a multiple of the row tile (no divisibility assert).
    Mp = _round_up(M, tm)
    if Mp != M:
        patches2d = jnp.pad(patches2d, ((0, Mp - M), (0, 0)))

    grid = (Mp // tm,)
    cost = pl.CostEstimate(
        flops=2 * Mp * K * Np,
        transcendentals=0,
        bytes_accessed=(Mp * K + K * Np + Np) * int(in_itemsize)
        + Mp * Np * int(out_itemsize),
    )

    out = pl.pallas_call(
        _patch_embed_kernel,
        out_shape=jax.ShapeDtypeStruct((Mp, Np), out_dtype),
        grid_spec=pltpu.PrefetchScalarGridSpec(
            num_scalar_prefetch=0,
            grid=grid,
            in_specs=[
                pl.BlockSpec((tm, K), lambda i: (i, 0)),   # patch rows (streamed)
                pl.BlockSpec((K, Np), lambda i: (0, 0)),   # weight (VMEM-resident)
                pl.BlockSpec((1, Np), lambda i: (0, 0)),   # bias   (VMEM-resident)
            ],
            out_specs=pl.BlockSpec((tm, Np), lambda i: (i, 0)),
        ),
        compiler_params=pltpu.CompilerParams(
            dimension_semantics=("parallel",),
            vmem_limit_bytes=32 * 1024 * 1024,
        ),
        cost_estimate=cost,
    )(patches2d, weight, bias2d)

    return out[:M, :N]


def patch_embedding(x, weight, bias, *, patch_len, stride, compute_dtype=None):
    """x: (B, C, L); weight: (patch_len, d_model); bias: (d_model,).

    compute_dtype=jnp.bfloat16 halves HBM traffic (recommended on v6e/v7x);
    the MXU accumulation stays in f32 either way.
    """
    B, C, L = x.shape
    d_model = weight.shape[1]

    # ReplicationPad1d((0, stride)): repeat the last timestep `stride` times.
    pad = jnp.repeat(x[..., -1:], stride, axis=-1)
    x_pad = jnp.concatenate([x, pad], axis=-1)  # (B, C, L + stride)

    # unfold(-1, patch_len, stride)
    num_patches = (L + stride - patch_len) // stride + 1
    idx = (jnp.arange(num_patches)[:, None] * stride
           + jnp.arange(patch_len)[None, :])          # (num_patches, patch_len)
    # TODO(synk): fuse this unfold gather into the Pallas kernel (sublane-strided
    # in-VMEM slices) to avoid materializing the expanded patch array in HBM;
    # kept in plain JAX because lane-strided in-kernel loads are not reliably
    # lowered and the output write (M x d_model) dominates traffic anyway.
    patches = x_pad[..., idx]                          # (B, C, num_patches, patch_len)

    M = B * C * num_patches
    patches2d = patches.reshape(M, patch_len)

    if compute_dtype is not None:
        patches2d = patches2d.astype(compute_dtype)
        weight = weight.astype(compute_dtype)
        bias = bias.astype(compute_dtype)

    out2d = _linear_pallas(patches2d, weight, bias, out_dtype=patches2d.dtype)
    return out2d.reshape(B, C, num_patches, d_model)


if __name__ == "__main__":
    # Small config consistent with the module.
    B, C, L = 2, 4, 16
    patch_len, stride, d_model = 8, 4, 32

    key = jax.random.PRNGKey(0)
    kx, kw, kb = jax.random.split(key, 3)

    x = jax.random.normal(kx, (B, C, L), dtype=jnp.float32)
    # nn.Linear(patch_len, d_model): weight (d_model, patch_len), bias (d_model,).
    # We store the transposed weight (patch_len, d_model) so the kernel does x @ W.
    weight = jax.random.normal(kw, (patch_len, d_model), dtype=jnp.float32) * 0.1
    bias = jax.random.normal(kb, (d_model,), dtype=jnp.float32) * 0.1

    out = patch_embedding(x, weight, bias, patch_len=patch_len, stride=stride)
    out = jax.block_until_ready(out)

    # Pure-JAX reference (padding + unfold + linear).
    pad = jnp.repeat(x[..., -1:], stride, axis=-1)
    x_pad = jnp.concatenate([x, pad], axis=-1)
    num_patches = (L + stride - patch_len) // stride + 1
    idx = jnp.arange(num_patches)[:, None] * stride + jnp.arange(patch_len)[None, :]
    ref = x_pad[..., idx] @ weight + bias

    assert out.shape == (B, C, num_patches, d_model)
    assert jnp.allclose(out, ref, atol=1e-5, rtol=1e-5)

    # bf16 streaming path (halves HBM read/write on v6e/v7x), f32 accumulate.
    out_bf16 = patch_embedding(x, weight, bias, patch_len=patch_len,
                               stride=stride, compute_dtype=jnp.bfloat16)
    out_bf16 = jax.block_until_ready(out_bf16)
    assert out_bf16.dtype == jnp.bfloat16
    assert jnp.allclose(out_bf16.astype(jnp.float32), ref, atol=5e-2, rtol=5e-2)

    print("KERNEL_OK")
</pallas_src>

<mosaic_0001>
module attributes {stable_mosaic.version = 11 : i64} {
  func.func @_patch_embed_kernel(%arg0: i32, %arg1: memref<32x8xf32, #tpu.memory_space<vmem>>, %arg2: memref<8x128xf32, #tpu.memory_space<vmem>>, %arg3: memref<1x128xf32, #tpu.memory_space<vmem>>, %arg4: memref<32x128xf32, #tpu.memory_space<vmem>>) attributes {dimension_semantics = [#tpu.dimension_semantics<parallel>], iteration_bounds = array<i64: 1>, scalar_prefetch = 0 : i64, scratch_operands = 0 : i64, tpu.core_type = #tpu.core_type<tc>, window_params = [{transform_indices = @transform_0, window_bounds = array<i64: 32, 8>}, {pipeline_mode = #tpu.pipeline_mode<synchronous>, transform_indices = @transform_1, window_bounds = array<i64: 8, 128>}, {pipeline_mode = #tpu.pipeline_mode<synchronous>, transform_indices = @transform_2, window_bounds = array<i64: 1, 128>}, {transform_indices = @transform_3, window_bounds = array<i64: 32, 128>}]} {
    %c0 = arith.constant 0 : index
    %c0_0 = arith.constant 0 : index
    %0 = vector.load %arg1[%c0, %c0_0] : memref<32x8xf32, #tpu.memory_space<vmem>>, vector<32x8xf32>
    %c0_1 = arith.constant 0 : index
    %c0_2 = arith.constant 0 : index
    %1 = vector.load %arg2[%c0_1, %c0_2] : memref<8x128xf32, #tpu.memory_space<vmem>>, vector<8x128xf32>
    %cst = arith.constant dense<0.000000e+00> : vector<32x128xf32>
    %2 = tpu.matmul %0, %1, %cst {dimension_numbers = #tpu.dot_dimension_numbers<[1], [0], [0], [1], [0, 0, 1, 1], [], []>} : vector<32x8xf32>, vector<8x128xf32>, vector<32x128xf32> -> vector<32x128xf32>
    %c0_3 = arith.constant 0 : index
    %c0_4 = arith.constant 0 : index
    %3 = vector.load %arg3[%c0_3, %c0_4] : memref<1x128xf32, #tpu.memory_space<vmem>>, vector<1x128xf32>
    %4 = vector.broadcast %3 : vector<1x128xf32> to vector<32x128xf32>
    %5 = arith.addf %2, %4 : vector<32x128xf32>
    %c0_5 = arith.constant 0 : index
    %c0_6 = arith.constant 0 : index
    %6 = vector.load %arg4[%c0_5, %c0_6] : memref<32x128xf32, #tpu.memory_space<vmem>>, vector<32x128xf32>
    tpu.vector_store %arg4[%c0_5, %c0_6], %5 {strides = array<i32>} : memref<32x128xf32, #tpu.memory_space<vmem>>, vector<32x128xf32>,
    return
  }
  func.func @transform_0(%arg0: i32) -> (i32, i32) {
    %c0_i32 = arith.constant 0 : i32
    %c0_i32_0 = arith.constant 0 : i32
    return %arg0, %c0_i32 : i32, i32
  }
  func.func @transform_1(%arg0: i32) -> (i32, i32) {
    %c0_i32 = arith.constant 0 : i32
    %c0_i32_0 = arith.constant 0 : i32
    %c0_i32_1 = arith.constant 0 : i32
    return %c0_i32, %c0_i32_0 : i32, i32
  }
  func.func @transform_2(%arg0: i32) -> (i32, i32) {
    %c0_i32 = arith.constant 0 : i32
    %c0_i32_0 = arith.constant 0 : i32
    %c0_i32_1 = arith.constant 0 : i32
    return %c0_i32, %c0_i32_0 : i32, i32
  }
  func.func @transform_3(%arg0: i32) -> (i32, i32) {
    %c0_i32 = arith.constant 0 : i32
    %c0_i32_0 = arith.constant 0 : i32
    return %arg0, %c0_i32 : i32, i32
  }
}

</mosaic_0001>

<llo_original>
// kernel: tpu_custom_call.1
$region0: #{tpu_custom_call.1}
  #allocation0 [shape = 'u32[]', space=smem, size = 0x4, offset = 0x4, fixed_abs, tag = 'smem constant byte address 0x4 - core index']
  #allocation1 [shape = 'u32[144,128]{1,0:T(1,128)}', space=vmem, size = 0x12000, scoped, tag = 'internal scratch']
  %s0 = inlined_call_operand.vmem [shape: f32[32,8], index: 0, kind: input, shape index: {}]
  %s1 = inlined_call_operand.vmem [shape: f32[8,128], index: 1, kind: input, shape index: {}]
  %s2 = inlined_call_operand.vmem [shape: f32[1,128], index: 2, kind: input, shape index: {}]
  %s3 = inlined_call_operand.hbm [shape: f32[32,128], index: 3, kind: output, shape index: {}]
  %s4 = sld [smem:[#allocation0]]
  $region22: #{tpu_custom_call.1} parent=0
    _
  %s6 = ssub.s32 1, %s4
  %s7 = scalar_select 0, %s6, %s4
  $region1: #{tpu_custom_call.1} parent=0
    #allocation2 [shape = 'u8[16384]{0}', space=vmem, size = 0x4000, scoped, tag = 'output window, operand 0, single buffered']
    #allocation3 [shape = 's32[1]{0}', space=sflag, size = 0x4, scoped, tag = 'scoped memory for tpu_custom_call.1']
    %8 = vsyncpa [#allocation3], 0
    // Predicated region
    $region2: #{tpu_custom_call.1} parent=1 // pred_check
      _
    $region3: #{tpu_custom_call.1} parent=1 // pred_check_branch
      %10 = sbr.rel (0) target = $region5
    $region4: #{tpu_custom_call.1} parent=1 // pred_region
      _
    $region5: #{tpu_custom_call.1} parent=1 // pred_fallthru
      _
    // Predicated region
    $region6: #{tpu_custom_call.1} parent=1 // pred_check
      _
    $region7: #{tpu_custom_call.1} parent=1 // pred_check_branch
      %12 = sbr.rel (0) target = $region9
    $region8: #{tpu_custom_call.1} parent=1 // pred_region
      _
    $region9: #{tpu_custom_call.1} parent=1 // pred_fallthru
      _
    // Predicated region
    $region10: #{tpu_custom_call.1} parent=1 // pred_check
      _
    $region11: #{tpu_custom_call.1} parent=1 // pred_check_branch
      %14 = sbr.rel (0) target = $region13
    $region12: #{tpu_custom_call.1} parent=1 // pred_region
      _
    $region13: #{tpu_custom_call.1} parent=1 // pred_fallthru
      _
    %v15 = vld [vmem:[%s0] sm:$0xff]
    %v16 = vld [vmem:[%s0 + $0x8] sm:$0xff]
    %v17 = vld [vmem:[%s0 + $0x10] sm:$0xff]
    %v18 = vld [vmem:[%s0 + $0x18] sm:$0xff]
    %v19 = vld [vmem:[%s1] sm:$0xff]
    %v20 = vld [vmem:[%s2] sm:$0x1]
    %v22 = vlaneseq
    %v23 = vshrl.u32 %v22, 7
    %v24 = vsub.s32 0, %v23
    %v25 = vrot.slane %v20, %v24
    %vm27 = vcmask 64512
    %v29 = vsel %vm27, %v15, 0
    %v32 = vsel %vm27, %v16, 0
    %v35 = vsel %vm27, %v17, 0
    %v38 = vsel %vm27, %v18, 0
    %40 = vmatprep.subr.mxu0 0.0
    %41 = vmatpush1.msra.mxu0 %v19
    %42 = vmatprep.subr.mxu0 0.0
    %43 = vmatpush1.msra.mxu0 0.0
    %44 = vmatprep.subr.mxu0 0.0
    %45 = vmatpush1.msra.mxu0 0.0
    %46 = vmatprep.subr.mxu0 0.0
    %47 = vmatpush1.msra.mxu0 0.0
    %48 = vmatprep.subr.mxu0 0.0
    %49 = vmatpush1.msra.mxu0 0.0
    %50 = vmatprep.subr.mxu0 0.0
    %51 = vmatpush1.msra.mxu0 0.0
    %52 = vmatprep.subr.mxu0 0.0
    %53 = vmatpush1.msra.mxu0 0.0
    %54 = vmatprep.subr.mxu0 0.0
    %55 = vmatpush1.msra.mxu0 0.0
    %56 = vmatprep.subr.mxu0 0.0
    %57 = vmatpush1.msra.mxu0 0.0
    %58 = vmatprep.subr.mxu0 0.0
    %59 = vmatpush1.msra.mxu0 0.0
    %60 = vmatprep.subr.mxu0 0.0
    %61 = vmatpush1.msra.mxu0 0.0
    %62 = vmatprep.subr.mxu0 0.0
    %63 = vmatpush1.msra.mxu0 0.0
    %64 = vmatprep.subr.mxu0 0.0
    %65 = vmatpush1.msra.mxu0 0.0
    %66 = vmatprep.subr.mxu0 0.0
    %67 = vmatpush1.msra.mxu0 0.0
    %68 = vmatprep.subr.mxu0 0.0
    %69 = vmatpush1.msra.mxu0 0.0
    %70 = vmatprep.subr.mxu0 0.0
    %71 = vmatpush1.msra.mxu0 0.0
    %72 = vmatprep.subr.mxu0 0.0
    %73 = vmatpush1.msra.mxu0 0.0
    %74 = vmatprep.subr.mxu0 0.0
    %75 = vmatpush1.msra.mxu0 0.0
    %76 = vmatprep.subr.mxu0 0.0
    %77 = vmatpush1.msra.mxu0 0.0
    %78 = vmatprep.subr.mxu0 0.0
    %79 = vmatpush1.msra.mxu0 0.0
    %80 = vmatprep.subr.mxu0 0.0
    %81 = vmatpush1.msra.mxu0 0.0
    %82 = vmatprep.subr.mxu0 0.0
    %83 = vmatpush1.msra.mxu0 0.0
    %84 = vmatprep.subr.mxu0 0.0
    %85 = vmatpush1.msra.mxu0 0.0
    %86 = vmatprep.subr.mxu0 0.0
    %87 = vmatpush1.msra.mxu0 0.0
    %88 = vmatprep.subr.mxu0 0.0
    %89 = vmatpush1.msra.mxu0 0.0
    %90 = vmatprep.subr.mxu0 0.0
    %91 = vmatpush1.msra.mxu0 0.0
    %92 = vmatprep.subr.mxu0 0.0
    %93 = vmatpush1.msra.mxu0 0.0
    %94 = vmatprep.subr.mxu0 0.0
    %95 = vmatpush1.msra.mxu0 0.0
    %96 = vmatprep.subr.mxu0 0.0
    %97 = vmatpush1.msra.mxu0 0.0
    %98 = vmatprep.subr.mxu0 0.0
    %99 = vmatpush1.msra.mxu0 0.0
    %100 = vmatprep.subr.mxu0 0.0
    %101 = vmatpush1.msra.mxu0 0.0
    %102 = vmatprep.subr.mxu0 0.0
    %103 = vmatpush1.msra.mxu0 0.0
    %104 = vmatprep.mubr.f32.mxu0 0.0
    %105 = vmatmul.mubr.f32.gmra.mrb[0].mxu0 %v29
    %v106 = vpop.f32.mrb[0].mxu0
    %v107 = vadd.f32 %v25, %v106
    %v108 = vpop.f32.mrb[0].mxu0
    %109 = vmatprep.mubr.f32.mxu0 0.0
    %110 = vmatmul.mubr.f32.gmra.mrb[0].mxu0 %v32
    %v111 = vpop.f32.mrb[0].mxu0
    %v112 = vadd.f32 %v25, %v111
    %v113 = vpop.f32.mrb[0].mxu0
    %114 = vmatprep.mubr.f32.mxu0 0.0
    %115 = vmatmul.mubr.f32.gmra.mrb[0].mxu0 %v35
    %v116 = vpop.f32.mrb[0].mxu0
    %v117 = vadd.f32 %v25, %v116
    %v118 = vpop.f32.mrb[0].mxu0
    %119 = vmatprep.mubr.f32.mxu0 0.0
    %120 = vmatmul.mubr.f32.gmra.mrb[0].mxu0 %v38
    %v121 = vpop.f32.mrb[0].mxu0
    %v122 = vadd.f32 %v25, %v121
    %v123 = vpop.f32.mrb[0].mxu0
    %124 = vdwg.mxu0
    %125 = vst [vmem:[#allocation2] sm:$0xff] %v107
    %126 = vst [vmem:[#allocation2 + $0x8] sm:$0xff] %v112
    %127 = vst [vmem:[#allocation2 + $0x10] sm:$0xff] %v117
    %128 = vst [vmem:[#allocation2 + $0x18] sm:$0xff] %v122
    // Predicated region
    $region14: #{tpu_custom_call.1} parent=1 // pred_check
      _
    $region15: #{tpu_custom_call.1} parent=1 // pred_check_branch
      %130 = sbr.rel (0) target = $region17
    $region16: #{tpu_custom_call.1} parent=1 // pred_region
      %s132 = ssub.s32 512, 512
      %133 = vsyncadd [#allocation3], %s132
      %s134 = sshll.u32 [#allocation2], 4
      %s135 = int_to_ptr.vmem [resolvable:$true] %s134
      %140 = dma.vmem_to_hbm [thread:$0]  %s135, 512, %s3, [#allocation3], 128, 128, 8
    $region17: #{tpu_custom_call.1} parent=1 // pred_fallthru
      _
    // Predicated region
    $region18: #{tpu_custom_call.1} parent=1 // pred_check
      _
    $region19: #{tpu_custom_call.1} parent=1 // pred_check_branch
      %142 = sbr.rel (0) target = $region21
    $region20: #{tpu_custom_call.1} parent=1 // pred_region
      %143 = dma.done [#allocation3], 512
    $region21: #{tpu_custom_call.1} parent=1 // pred_fallthru
      _
    %144 = vsyncpa [#allocation3], 1

</llo_original>
